<compile_context>
chip_gen: v7x
topology: tpu7x:2x2x1
jax: 0.10.0
libtpu: 0.0.40
codegen_flags: <defaults>
</compile_context>

<pallas_src>
import functools

import jax
import jax.numpy as jnp
from jax.experimental import pallas as pl
from jax.experimental.pallas import tpu as pltpu

_LANE_W = 1024                    # lane-dense last dim (multiple of 128)
_TILE_R = 256                     # rows per block -> (256,1024) f32 block = 1 MiB
_TILE_G = _TILE_R // 8            # sublane-groups per block (3-D layout)
_FUSED_MAX_ELEMS = 512 * 1024     # single fused kernel below this size
_VMEM_LIMIT = 32 * 1024 * 1024    # safe on v5e/v6e (128 MiB phys) and v7x (64 MiB phys)
_PAD_LOGIT = -100.0               # BCE(x=-100, t=0) ~= exp(-100) ~= 0


def _pow_gamma(d, gamma):
    """|d|**gamma, specialised for small integer gamma (avoids pow -> exp/log)."""
    g = float(gamma)
    if g == 0.0:
        return jnp.ones_like(d)
    if g == int(g) and 1.0 <= g <= 4.0:
        r = d
        for _ in range(int(g) - 1):
            r = r * d
        return r
    return d ** jnp.float32(g)


def _bce_elem(x, t):
    # numerically stable per-element BCE-with-logits
    return jnp.maximum(x, 0.0) - x * t + jnp.log1p(jnp.exp(-jnp.abs(x)))


# ---------------------------------------------------------------------------
# Fused single-call kernel (whole tensor resident in VMEM). scale = alpha / n.
# ---------------------------------------------------------------------------
def _fused_kernel(x_ref, t_ref, o_ref, *, gamma, scale):
    x = x_ref[...].astype(jnp.float32)
    t = t_ref[...].astype(jnp.float32)
    m = jnp.sum(_bce_elem(x, t)) * jnp.float32(scale)      # = bce_mean * alpha
    sig = 1.0 / (1.0 + jnp.exp(-x))
    d = jnp.abs(t - sig)
    o_ref[...] = (m * _pow_gamma(d, gamma)).astype(o_ref.dtype)


# ---------------------------------------------------------------------------
# Pass 1: per-block partial sums of BCE. Parallel grid; accumulation stays in
# vregs (VPU adds over the leading dim), one small (1,8,LANE_W) store per block.
# ---------------------------------------------------------------------------
def _bce_partial_kernel(x_ref, t_ref, psum_ref):
    x = x_ref[...].astype(jnp.float32)       # (TILE_G, 8, LANE_W)
    t = t_ref[...].astype(jnp.float32)
    bce = _bce_elem(x, t)
    psum_ref[...] = jnp.sum(bce, axis=0, keepdims=True)    # (1, 8, LANE_W)


# ---------------------------------------------------------------------------
# Pass 2: elementwise focal modulation scaled by the scalar (bce_mean * alpha).
# ---------------------------------------------------------------------------
def _focal_kernel(scale_ref, x_ref, t_ref, o_ref, *, gamma):
    m = scale_ref[0, 0]                      # scalar in SMEM
    x = x_ref[...].astype(jnp.float32)
    t = t_ref[...].astype(jnp.float32)
    sig = 1.0 / (1.0 + jnp.exp(-x))
    d = jnp.abs(t - sig)
    o_ref[...] = (m * _pow_gamma(d, gamma)).astype(o_ref.dtype)


def _pad_flat(xf, tf, n, multiple):
    pad = (-n) % multiple
    if pad:
        xf = jnp.pad(xf, (0, pad), constant_values=_PAD_LOGIT)
        tf = jnp.pad(tf, (0, pad), constant_values=0)
    return xf, tf, n + pad


def focal_loss(x, target, gamma=2.0, alpha=1.0):
    """Pallas implementation of FocalLoss.forward (reduction='mean' default)."""
    orig_shape = x.shape
    out_dtype = x.dtype
    n = x.size
    scale = float(alpha) / float(n)          # folds 'mean' (/n) and alpha

    xf = x.reshape(-1)
    tf = target.reshape(-1)

    # ------------------- fused fast path (small tensors) --------------------
    if n <= _FUSED_MAX_ELEMS:
        xf, tf, total = _pad_flat(xf, tf, n, 8 * _LANE_W)
        rows = total // _LANE_W
        x2 = xf.reshape(rows, _LANE_W)
        t2 = tf.reshape(rows, _LANE_W)
        out2 = pl.pallas_call(
            functools.partial(_fused_kernel, gamma=gamma, scale=scale),
            out_shape=jax.ShapeDtypeStruct((rows, _LANE_W), out_dtype),
            grid=(1,),
            in_specs=[
                pl.BlockSpec((rows, _LANE_W), lambda i: (0, 0)),
                pl.BlockSpec((rows, _LANE_W), lambda i: (0, 0)),
            ],
            out_specs=pl.BlockSpec((rows, _LANE_W), lambda i: (0, 0)),
            compiler_params=pltpu.CompilerParams(
                dimension_semantics=("arbitrary",),
                vmem_limit_bytes=_VMEM_LIMIT),
        )(x2, t2)
        return out2.reshape(-1)[:n].reshape(orig_shape)

    # ------------------- two-pass path (large tensors) ----------------------
    xf, tf, total = _pad_flat(xf, tf, n, _TILE_R * _LANE_W)
    groups = total // (8 * _LANE_W)          # number of 8-row sublane groups
    nblk = groups // _TILE_G
    x3 = xf.reshape(groups, 8, _LANE_W)
    t3 = tf.reshape(groups, 8, _LANE_W)

    # pass 1: per-block partial BCE sums (fully parallel grid)
    partials = pl.pallas_call(
        _bce_partial_kernel,
        out_shape=jax.ShapeDtypeStruct((nblk, 8, _LANE_W), jnp.float32),
        grid=(nblk,),
        in_specs=[
            pl.BlockSpec((_TILE_G, 8, _LANE_W), lambda i: (i, 0, 0)),
            pl.BlockSpec((_TILE_G, 8, _LANE_W), lambda i: (i, 0, 0)),
        ],
        out_specs=pl.BlockSpec((1, 8, _LANE_W), lambda i: (i, 0, 0)),
        compiler_params=pltpu.CompilerParams(
            dimension_semantics=("parallel",),
            vmem_limit_bytes=_VMEM_LIMIT),
    )(x3, t3)

    # tiny final reduction; fold mean's /n and alpha into one scalar
    m = (jnp.sum(partials, dtype=jnp.float32) * jnp.float32(scale)).reshape(1, 1)

    # pass 2: elementwise modulation scaled by m
    out3 = pl.pallas_call(
        functools.partial(_focal_kernel, gamma=gamma),
        out_shape=jax.ShapeDtypeStruct((groups, 8, _LANE_W), out_dtype),
        grid=(nblk,),
        in_specs=[
            pl.BlockSpec(memory_space=pltpu.MemorySpace.SMEM),   # scalar m
            pl.BlockSpec((_TILE_G, 8, _LANE_W), lambda i: (i, 0, 0)),
            pl.BlockSpec((_TILE_G, 8, _LANE_W), lambda i: (i, 0, 0)),
        ],
        out_specs=pl.BlockSpec((_TILE_G, 8, _LANE_W), lambda i: (i, 0, 0)),
        compiler_params=pltpu.CompilerParams(
            dimension_semantics=("parallel",),
            vmem_limit_bytes=_VMEM_LIMIT),
    )(m, x3, t3)

    return out3.reshape(-1)[:n].reshape(orig_shape)


def _focal_loss_ref(x, t, gamma=2.0, alpha=1.0):
    x = x.astype(jnp.float32)
    t = t.astype(jnp.float32)
    bce = jnp.maximum(x, 0.0) - x * t + jnp.log1p(jnp.exp(-jnp.abs(x)))
    sig = 1.0 / (1.0 + jnp.exp(-x))
    return jnp.mean(bce) * alpha * jnp.abs(t - sig) ** gamma


if __name__ == "__main__":
    key = jax.random.PRNGKey(0)
    kx, kt, kx2, kt2 = jax.random.split(key, 4)

    # small NCHW case consistent with the module (exercises the fused path)
    shape = (2, 4, 16, 16)
    x = jax.random.normal(kx, shape, dtype=jnp.float32) * 2.0
    target = jax.random.bernoulli(kt, 0.3, shape).astype(jnp.float32)
    out = jax.block_until_ready(focal_loss(x, target, gamma=2.0, alpha=1.0))
    ref = _focal_loss_ref(x, target, gamma=2.0, alpha=1.0)
    assert out.shape == shape and out.dtype == x.dtype
    assert jnp.allclose(out, ref, atol=1e-6, rtol=1e-4), "fused path mismatch"

    # larger, non-aligned NCHW case (exercises the two-pass tiled path + padding)
    shape2 = (3, 30, 80, 80)   # 576000 elements, not a multiple of 256*1024
    x2 = jax.random.normal(kx2, shape2, dtype=jnp.float32) * 2.0
    target2 = jax.random.bernoulli(kt2, 0.3, shape2).astype(jnp.float32)
    out2 = jax.block_until_ready(focal_loss(x2, target2, gamma=2.0, alpha=1.0))
    ref2 = _focal_loss_ref(x2, target2, gamma=2.0, alpha=1.0)
    assert out2.shape == shape2 and out2.dtype == x2.dtype
    assert jnp.allclose(out2, ref2, atol=1e-6, rtol=5e-4), "two-pass path mismatch"

    print("KERNEL_OK")
</pallas_src>

<mosaic_0001>
module attributes {stable_mosaic.version = 11 : i64} {
  func.func @_fused_kernel(%arg0: i32, %arg1: memref<8x1024xf32, #tpu.memory_space<vmem>>, %arg2: memref<8x1024xf32, #tpu.memory_space<vmem>>, %arg3: memref<8x1024xf32, #tpu.memory_space<vmem>>) attributes {dimension_semantics = [#tpu.dimension_semantics<arbitrary>], iteration_bounds = array<i64: 1>, scalar_prefetch = 0 : i64, scratch_operands = 0 : i64, tpu.core_type = #tpu.core_type<tc>, window_params = [{pipeline_mode = #tpu.pipeline_mode<synchronous>, transform_indices = @transform_0, window_bounds = array<i64: 8, 1024>}, {pipeline_mode = #tpu.pipeline_mode<synchronous>, transform_indices = @transform_1, window_bounds = array<i64: 8, 1024>}, {pipeline_mode = #tpu.pipeline_mode<synchronous>, transform_indices = @transform_2, window_bounds = array<i64: 8, 1024>}]} {
    %c0 = arith.constant 0 : index
    %c0_0 = arith.constant 0 : index
    %0 = vector.load %arg1[%c0, %c0_0] : memref<8x1024xf32, #tpu.memory_space<vmem>>, vector<8x1024xf32>
    %c0_1 = arith.constant 0 : index
    %c0_2 = arith.constant 0 : index
    %1 = vector.load %arg2[%c0_1, %c0_2] : memref<8x1024xf32, #tpu.memory_space<vmem>>, vector<8x1024xf32>
    %cst = arith.constant 0.000000e+00 : f32
    %2 = vector.broadcast %cst : f32 to vector<8x1024xf32>
    %3 = arith.maximumf %0, %2 : vector<8x1024xf32>
    %4 = arith.mulf %0, %1 : vector<8x1024xf32>
    %5 = arith.subf %3, %4 : vector<8x1024xf32>
    %6 = math.absf %0 : vector<8x1024xf32>
    %cst_3 = arith.constant 0.000000e+00 : f32
    %7 = vector.broadcast %cst_3 : f32 to vector<8x1024xf32>
    %8 = arith.subf %7, %6 : vector<8x1024xf32>
    %9 = math.exp %8 : vector<8x1024xf32>
    %10 = math.log1p %9 : vector<8x1024xf32>
    %11 = arith.addf %5, %10 : vector<8x1024xf32>
    %12 = vector.shape_cast %11 : vector<8x1024xf32> to vector<1x8x1024xf32>
    %cst_4 = arith.constant dense<0.000000e+00> : vector<1xf32>
    %13 = vector.multi_reduction <add>, %12, %cst_4 [1, 2] : vector<1x8x1024xf32> to vector<1xf32>
    %14 = vector.shape_cast %13 : vector<1xf32> to vector<1x1x1xf32>
    %15 = vector.extract %14[0, 0, 0] : f32 from vector<1x1x1xf32>
    %cst_5 = arith.constant 4.8828125E-4 : f32
    %16 = arith.mulf %15, %cst_5 : f32
    %cst_6 = arith.constant 0.000000e+00 : f32
    %17 = vector.broadcast %cst_6 : f32 to vector<8x1024xf32>
    %18 = arith.subf %17, %0 : vector<8x1024xf32>
    %19 = math.exp %18 : vector<8x1024xf32>
    %cst_7 = arith.constant 1.000000e+00 : f32
    %20 = vector.broadcast %cst_7 : f32 to vector<8x1024xf32>
    %21 = arith.addf %20, %19 : vector<8x1024xf32>
    %cst_8 = arith.constant 1.000000e+00 : f32
    %22 = vector.broadcast %cst_8 : f32 to vector<8x1024xf32>
    %23 = arith.divf %22, %21 : vector<8x1024xf32>
    %24 = arith.subf %1, %23 : vector<8x1024xf32>
    %25 = math.absf %24 : vector<8x1024xf32>
    %26 = arith.mulf %25, %25 : vector<8x1024xf32>
    %27 = vector.broadcast %16 : f32 to vector<8x1024xf32>
    %28 = arith.mulf %27, %26 : vector<8x1024xf32>
    %c0_9 = arith.constant 0 : index
    %c0_10 = arith.constant 0 : index
    %29 = vector.load %arg3[%c0_9, %c0_10] : memref<8x1024xf32, #tpu.memory_space<vmem>>, vector<8x1024xf32>
    tpu.vector_store %arg3[%c0_9, %c0_10], %28 {strides = array<i32>} : memref<8x1024xf32, #tpu.memory_space<vmem>>, vector<8x1024xf32>,
    return
  }
  func.func @transform_0(%arg0: i32) -> (i32, i32) {
    %c0_i32 = arith.constant 0 : i32
    %c0_i32_0 = arith.constant 0 : i32
    %c0_i32_1 = arith.constant 0 : i32
    return %c0_i32, %c0_i32_0 : i32, i32
  }
  func.func @transform_1(%arg0: i32) -> (i32, i32) {
    %c0_i32 = arith.constant 0 : i32
    %c0_i32_0 = arith.constant 0 : i32
    %c0_i32_1 = arith.constant 0 : i32
    return %c0_i32, %c0_i32_0 : i32, i32
  }
  func.func @transform_2(%arg0: i32) -> (i32, i32) {
    %c0_i32 = arith.constant 0 : i32
    %c0_i32_0 = arith.constant 0 : i32
    %c0_i32_1 = arith.constant 0 : i32
    return %c0_i32, %c0_i32_0 : i32, i32
  }
}

</mosaic_0001>

<llo_original>
// kernel: tpu_custom_call.1
$region0: #{tpu_custom_call.1}
  #allocation0 [shape = 'u32[]', space=smem, size = 0x4, offset = 0x4, fixed_abs, tag = 'smem constant byte address 0x4 - core index']
  #allocation1 [shape = 'u32[144,128]{1,0:T(1,128)}', space=vmem, size = 0x12000, scoped, tag = 'internal scratch']
  %s0 = inlined_call_operand.hbm [shape: f32[8,1024], index: 0, kind: input, shape index: {}]
  %s1 = inlined_call_operand.hbm [shape: f32[8,1024], index: 1, kind: input, shape index: {}]
  %s2 = inlined_call_operand.hbm [shape: f32[8,1024], index: 2, kind: output, shape index: {}]
  %s3 = sld [smem:[#allocation0]]
  $region26: #{tpu_custom_call.1} parent=0
    _
  %s5 = ssub.s32 1, %s3
  %s6 = scalar_select 0, %s5, %s3
  $region1: #{tpu_custom_call.1} parent=0
    #allocation2 [shape = 'u8[32768]{0}', space=vmem, size = 0x8000, scoped, tag = 'input window, operand 0, single buffered']
    #allocation3 [shape = 's32[1]{0}', space=sflag, size = 0x4, scoped, tag = 'scoped memory for tpu_custom_call.1']
    #allocation4 [shape = 's32[1]{0}', space=sflag, size = 0x4, scoped, tag = 'scoped memory for tpu_custom_call.1']
    #allocation5 [shape = 'u8[32768]{0}', space=vmem, size = 0x8000, scoped, tag = 'input window, operand 1, single buffered']
    #allocation6 [shape = 's32[1]{0}', space=sflag, size = 0x4, scoped, tag = 'scoped memory for tpu_custom_call.1']
    #allocation7 [shape = 'u8[32768]{0}', space=vmem, size = 0x8000, scoped, tag = 'output window, operand 0, single buffered']
    %7 = vsyncpa [#allocation3], 0
    %8 = vsyncpa [#allocation6], 0
    %9 = vsyncpa [#allocation4], 0
    // Predicated region
    $region2: #{tpu_custom_call.1} parent=1 // pred_check
      _
    $region3: #{tpu_custom_call.1} parent=1 // pred_check_branch
      %11 = sbr.rel (0) target = $region5
    $region4: #{tpu_custom_call.1} parent=1 // pred_region
      %s13 = ssub.s32 1024, 1024
      %14 = vsyncadd [#allocation3], %s13
      %s16 = sshll.u32 [#allocation2], 4
      %s17 = int_to_ptr.vmem [resolvable:$true] %s16
      %19 = dma.hbm_to_vmem [thread:$0]  %s0, 1024, %s17, [#allocation3]
    $region5: #{tpu_custom_call.1} parent=1 // pred_fallthru
      _
    // Predicated region
    $region6: #{tpu_custom_call.1} parent=1 // pred_check
      _
    $region7: #{tpu_custom_call.1} parent=1 // pred_check_branch
      %21 = sbr.rel (0) target = $region9
    $region8: #{tpu_custom_call.1} parent=1 // pred_region
      %s23 = ssub.s32 1024, 1024
      %24 = vsyncadd [#allocation6], %s23
      %s26 = sshll.u32 [#allocation5], 4
      %s27 = int_to_ptr.vmem [resolvable:$true] %s26
      %29 = dma.hbm_to_vmem [thread:$0]  %s1, 1024, %s27, [#allocation6]
    $region9: #{tpu_custom_call.1} parent=1 // pred_fallthru
      _
    // Predicated region
    $region10: #{tpu_custom_call.1} parent=1 // pred_check
      _
    $region11: #{tpu_custom_call.1} parent=1 // pred_check_branch
      %31 = sbr.rel (0) target = $region13
    $region12: #{tpu_custom_call.1} parent=1 // pred_region
      %32 = dma.done [#allocation3], 1024
    $region13: #{tpu_custom_call.1} parent=1 // pred_fallthru
      _
    // Predicated region
    $region14: #{tpu_custom_call.1} parent=1 // pred_check
      _
    $region15: #{tpu_custom_call.1} parent=1 // pred_check_branch
      %34 = sbr.rel (0) target = $region17
    $region16: #{tpu_custom_call.1} parent=1 // pred_region
      %35 = dma.done [#allocation6], 1024
    $region17: #{tpu_custom_call.1} parent=1 // pred_fallthru
      _
    %v36 = vld [vmem:[#allocation2] sm:$0xff]
    %v37 = vld [vmem:[#allocation2 + $0x8] sm:$0xff]
    %v38 = vld [vmem:[#allocation2 + $0x10] sm:$0xff]
    %v39 = vld [vmem:[#allocation2 + $0x18] sm:$0xff]
    %v40 = vld [vmem:[#allocation2 + $0x20] sm:$0xff]
    %v41 = vld [vmem:[#allocation2 + $0x28] sm:$0xff]
    %v42 = vld [vmem:[#allocation2 + $0x30] sm:$0xff]
    %v43 = vld [vmem:[#allocation2 + $0x38] sm:$0xff]
    %v44 = vld [vmem:[#allocation5] sm:$0xff]
    %v45 = vld [vmem:[#allocation5 + $0x8] sm:$0xff]
    %v46 = vld [vmem:[#allocation5 + $0x10] sm:$0xff]
    %v47 = vld [vmem:[#allocation5 + $0x18] sm:$0xff]
    %v48 = vld [vmem:[#allocation5 + $0x20] sm:$0xff]
    %v49 = vld [vmem:[#allocation5 + $0x28] sm:$0xff]
    %v50 = vld [vmem:[#allocation5 + $0x30] sm:$0xff]
    %v51 = vld [vmem:[#allocation5 + $0x38] sm:$0xff]
    %v52 = vmax.f32 %v36, 0.0
    %v53 = vmax.f32 %v37, 0.0
    %v54 = vmax.f32 %v38, 0.0
    %v55 = vmax.f32 %v39, 0.0
    %v56 = vmax.f32 %v40, 0.0
    %v57 = vmax.f32 %v41, 0.0
    %v58 = vmax.f32 %v42, 0.0
    %v59 = vmax.f32 %v43, 0.0
    %v60 = vmul.f32 %v36, %v44
    %v61 = vmul.f32 %v37, %v45
    %v62 = vmul.f32 %v38, %v46
    %v63 = vmul.f32 %v39, %v47
    %v64 = vmul.f32 %v40, %v48
    %v65 = vmul.f32 %v41, %v49
    %v66 = vmul.f32 %v42, %v50
    %v67 = vmul.f32 %v43, %v51
    %v68 = vsub.f32 %v52, %v60
    %v69 = vsub.f32 %v53, %v61
    %v70 = vsub.f32 %v54, %v62
    %v71 = vsub.f32 %v55, %v63
    %v72 = vsub.f32 %v56, %v64
    %v73 = vsub.f32 %v57, %v65
    %v74 = vsub.f32 %v58, %v66
    %v75 = vsub.f32 %v59, %v67
    %v76 = vand.u32 2147483647, %v36
    %v77 = vand.u32 2147483647, %v37
    %v78 = vand.u32 2147483647, %v38
    %v79 = vand.u32 2147483647, %v39
    %v80 = vand.u32 2147483647, %v40
    %v81 = vand.u32 2147483647, %v41
    %v82 = vand.u32 2147483647, %v42
    %v83 = vand.u32 2147483647, %v43
    %v84 = vsub.f32 0.0, %v76
    %v85 = vsub.f32 0.0, %v77
    %v86 = vsub.f32 0.0, %v78
    %v87 = vsub.f32 0.0, %v79
    %v88 = vsub.f32 0.0, %v80
    %v89 = vsub.f32 0.0, %v81
    %v90 = vsub.f32 0.0, %v82
    %v91 = vsub.f32 0.0, %v83
    %v92 = vmul.f32 %v84, 1.442695
    %v93 = vpow.pop %v92
    %v94 = vmul.f32 %v85, 1.442695
    %v95 = vpow.pop %v94
    %v96 = vmul.f32 %v86, 1.442695
    %v97 = vpow.pop %v96
    %v98 = vmul.f32 %v87, 1.442695
    %v99 = vpow.pop %v98
    %v100 = vmul.f32 %v88, 1.442695
    %v101 = vpow.pop %v100
    %v102 = vmul.f32 %v89, 1.442695
    %v103 = vpow.pop %v102
    %v104 = vmul.f32 %v90, 1.442695
    %v105 = vpow.pop %v104
    %v106 = vmul.f32 %v91, 1.442695
    %v107 = vpow.pop %v106
    %v108 = vadd.f32 %v93, 1.0
    %v109 = vlog2.pop %v108
    %v110 = vmul.f32 %v109, 0.6931472
    %v111 = vmul.f32 -0.5, %v93
    %v112 = vadd.f32 %v111, 1.0
    %v113 = vmul.f32 %v112, %v93
    %v114 = vand.u32 2147483647, %v93
    %vm115 = vcmp.lt.f32.partialorder %v114, 0.0004427343
    %v116 = vsel %vm115, %v113, %v110
    %v117 = vadd.f32 %v95, 1.0
    %v118 = vlog2.pop %v117
    %v119 = vmul.f32 %v118, 0.6931472
    %v120 = vmul.f32 -0.5, %v95
    %v121 = vadd.f32 %v120, 1.0
    %v122 = vmul.f32 %v121, %v95
    %v123 = vand.u32 2147483647, %v95
    %vm124 = vcmp.lt.f32.partialorder %v123, 0.0004427343
    %v125 = vsel %vm124, %v122, %v119
    %v126 = vadd.f32 %v97, 1.0
    %v127 = vlog2.pop %v126
    %v128 = vmul.f32 %v127, 0.6931472
    %v129 = vmul.f32 -0.5, %v97
    %v130 = vadd.f32 %v129, 1.0
    %v131 = vmul.f32 %v130, %v97
    %v132 = vand.u32 2147483647, %v97
    %vm133 = vcmp.lt.f32.partialorder %v132, 0.0004427343
    %v134 = vsel %vm133, %v131, %v128
    %v135 = vadd.f32 %v99, 1.0
    %v136 = vlog2.pop %v135
    %v137 = vmul.f32 %v136, 0.6931472
    %v138 = vmul.f32 -0.5, %v99
    %v139 = vadd.f32 %v138, 1.0
    %v140 = vmul.f32 %v139, %v99
    %v141 = vand.u32 2147483647, %v99
    %vm142 = vcmp.lt.f32.partialorder %v141, 0.0004427343
    %v143 = vsel %vm142, %v140, %v137
    %v144 = vadd.f32 %v101, 1.0
    %v145 = vlog2.pop %v144
    %v146 = vmul.f32 %v145, 0.6931472
    %v147 = vmul.f32 -0.5, %v101
    %v148 = vadd.f32 %v147, 1.0
    %v149 = vmul.f32 %v148, %v101
    %v150 = vand.u32 2147483647, %v101
    %vm151 = vcmp.lt.f32.partialorder %v150, 0.0004427343
    %v152 = vsel %vm151, %v149, %v146
    %v153 = vadd.f32 %v103, 1.0
    %v154 = vlog2.pop %v153
    %v155 = vmul.f32 %v154, 0.6931472
    %v156 = vmul.f32 -0.5, %v103
    %v157 = vadd.f32 %v156, 1.0
    %v158 = vmul.f32 %v157, %v103
    %v159 = vand.u32 2147483647, %v103
    %vm160 = vcmp.lt.f32.partialorder %v159, 0.0004427343
    %v161 = vsel %vm160, %v158, %v155
    %v162 = vadd.f32 %v105, 1.0
    %v163 = vlog2.pop %v162
    %v164 = vmul.f32 %v163, 0.6931472
    %v165 = vmul.f32 -0.5, %v105
    %v166 = vadd.f32 %v165, 1.0
    %v167 = vmul.f32 %v166, %v105
    %v168 = vand.u32 2147483647, %v105
    %vm169 = vcmp.lt.f32.partialorder %v168, 0.0004427343
    %v170 = vsel %vm169, %v167, %v164
    %v171 = vadd.f32 %v107, 1.0
    %v172 = vlog2.pop %v171
    %v173 = vmul.f32 %v172, 0.6931472
    %v174 = vmul.f32 -0.5, %v107
    %v175 = vadd.f32 %v174, 1.0
    %v176 = vmul.f32 %v175, %v107
    %v177 = vand.u32 2147483647, %v107
    %vm178 = vcmp.lt.f32.partialorder %v177, 0.0004427343
    %v179 = vsel %vm178, %v176, %v173
    %v180 = vadd.f32 %v68, %v116
    %v181 = vadd.f32 %v69, %v125
    %v182 = vadd.f32 %v70, %v134
    %v183 = vadd.f32 %v71, %v143
    %v184 = vadd.f32 %v72, %v152
    %v185 = vadd.f32 %v73, %v161
    %v186 = vadd.f32 %v74, %v170
    %v187 = vadd.f32 %v75, %v179
    %v188 = vadd.f32 %v180, %v181
    %v189 = vadd.f32 %v188, %v182
    %v190 = vadd.f32 %v189, %v183
    %v191 = vadd.f32 %v190, %v184
    %v192 = vadd.f32 %v191, %v185
    %v193 = vadd.f32 %v192, %v186
    %v194 = vadd.f32 %v193, %v187
    %195 = vadd.xlane.f32.xlu0 %v194
    %v196 = vpop.xlane.xlu0 %195
    %v197 = vrot.slane %v196, 4
    %v198 = vadd.f32 %v196, %v197
    %v199 = vrot.slane %v198, 2
    %v200 = vadd.f32 %v198, %v199
    %v201 = vrot.slane %v200, 1
    %v202 = vadd.f32 %v200, %v201
    %s203 = vtos %v202
    %s204 = smul.f32 %s203, 0.00048828125
    %v205 = vsub.f32 0.0, %v36
    %v206 = vsub.f32 0.0, %v37
    %v207 = vsub.f32 0.0, %v38
    %v208 = vsub.f32 0.0, %v39
    %v209 = vsub.f32 0.0, %v40
    %v210 = vsub.f32 0.0, %v41
    %v211 = vsub.f32 0.0, %v42
    %v212 = vsub.f32 0.0, %v43
    %v213 = vmul.f32 %v205, 1.442695
    %v214 = vpow.pop %v213
    %v215 = vmul.f32 %v206, 1.442695
    %v216 = vpow.pop %v215
    %v217 = vmul.f32 %v207, 1.442695
    %v218 = vpow.pop %v217
    %v219 = vmul.f32 %v208, 1.442695
    %v220 = vpow.pop %v219
    %v221 = vmul.f32 %v209, 1.442695
    %v222 = vpow.pop %v221
    %v223 = vmul.f32 %v210, 1.442695
    %v224 = vpow.pop %v223
    %v225 = vmul.f32 %v211, 1.442695
    %v226 = vpow.pop %v225
    %v227 = vmul.f32 %v212, 1.442695
    %v228 = vpow.pop %v227
    %v229 = vadd.f32 %v214, 1.0
    %v230 = vadd.f32 %v216, 1.0
    %v231 = vadd.f32 %v218, 1.0
    %v232 = vadd.f32 %v220, 1.0
    %v233 = vadd.f32 %v222, 1.0
    %v234 = vadd.f32 %v224, 1.0
    %v235 = vadd.f32 %v226, 1.0
    %v236 = vadd.f32 %v228, 1.0
    %v237 = vrcp.pop %v229
    %v238 = vmul.f32 1.0, %v237
    %v239 = vrcp.pop %v230
    %v240 = vmul.f32 1.0, %v239
    %v241 = vrcp.pop %v231
    %v242 = vmul.f32 1.0, %v241
    %v243 = vrcp.pop %v232
    %v244 = vmul.f32 1.0, %v243
    %v245 = vrcp.pop %v233
    %v246 = vmul.f32 1.0, %v245
    %v247 = vrcp.pop %v234
    %v248 = vmul.f32 1.0, %v247
    %v249 = vrcp.pop %v235
    %v250 = vmul.f32 1.0, %v249
    %v251 = vrcp.pop %v236
    %v252 = vmul.f32 1.0, %v251
    %v253 = vsub.f32 %v44, %v238
    %v254 = vsub.f32 %v45, %v240
    %v255 = vsub.f32 %v46, %v242
    %v256 = vsub.f32 %v47, %v244
    %v257 = vsub.f32 %v48, %v246
    %v258 = vsub.f32 %v49, %v248
    %v259 = vsub.f32 %v50, %v250
    %v260 = vsub.f32 %v51, %v252
    %v261 = vand.u32 2147483647, %v253
    %v262 = vand.u32 2147483647, %v254
    %v263 = vand.u32 2147483647, %v255
    %v264 = vand.u32 2147483647, %v256
    %v265 = vand.u32 2147483647, %v257
    %v266 = vand.u32 2147483647, %v258
    %v267 = vand.u32 2147483647, %v259
    %v268 = vand.u32 2147483647, %v260
    %v269 = vmul.f32 %v261, %v261
    %v270 = vmul.f32 %v262, %v262
    %v271 = vmul.f32 %v263, %v263
    %v272 = vmul.f32 %v264, %v264
    %v273 = vmul.f32 %v265, %v265
    %v274 = vmul.f32 %v266, %v266
    %v275 = vmul.f32 %v267, %v267
    %v276 = vmul.f32 %v268, %v268
    %v277 = vstv %s204
    %v278 = vmul.f32 %v277, %v269
    %v279 = vmul.f32 %v277, %v270
    %v280 = vmul.f32 %v277, %v271
    %v281 = vmul.f32 %v277, %v272
    %v282 = vmul.f32 %v277, %v273
    %v283 = vmul.f32 %v277, %v274
    %v284 = vmul.f32 %v277, %v275
    %v285 = vmul.f32 %v277, %v276
    %286 = vst [vmem:[#allocation7] sm:$0xff] %v278
    %287 = vst [vmem:[#allocation7 + $0x8] sm:$0xff] %v279
    %288 = vst [vmem:[#allocation7 + $0x10] sm:$0xff] %v280
    %289 = vst [vmem:[#allocation7 + $0x18] sm:$0xff] %v281
    %290 = vst [vmem:[#allocation7 + $0x20] sm:$0xff] %v282
    %291 = vst [vmem:[#allocation7 + $0x28] sm:$0xff] %v283
    %292 = vst [vmem:[#allocation7 + $0x30] sm:$0xff] %v284
    %293 = vst [vmem:[#allocation7 + $0x38] sm:$0xff] %v285
    // Predicated region
    $region18: #{tpu_custom_call.1} parent=1 // pred_check
      _
    $region19: #{tpu_custom_call.1} parent=1 // pred_check_branch
      %295 = sbr.rel (0) target = $region21
    $region20: #{tpu_custom_call.1} parent=1 // pred_region
      %s297 = ssub.s32 1024, 1024
      %298 = vsyncadd [#allocation4], %s297
      %s300 = sshll.u32 [#allocation7], 4
      %s301 = int_to_ptr.vmem [resolvable:$true] %s300
      %303 = dma.vmem_to_hbm [thread:$0]  %s301, 1024, %s2, [#allocation4]
    $region21: #{tpu_custom_call.1} parent=1 // pred_fallthru
      _
    // Predicated region
    $region22: #{tpu_custom_call.1} parent=1 // pred_check
      _
    $region23: #{tpu_custom_call.1} parent=1 // pred_check_branch
      %305 = sbr.rel (0) target = $region25
    $region24: #{tpu_custom_call.1} parent=1 // pred_region
      %306 = dma.done [#allocation4], 1024
    $region25: #{tpu_custom_call.1} parent=1 // pred_fallthru
      _
    %307 = vsyncpa [#allocation3], 1
    %308 = vsyncpa [#allocation6], 1
    %309 = vsyncpa [#allocation4], 1

</llo_original>
